<compile_context>
chip_gen: v5e
topology: v5e:2x2
jax: 0.10.0
libtpu: 0.0.40
codegen_flags: <defaults>
</compile_context>

<pallas_src>
import math

import jax
import jax.numpy as jnp
from jax.experimental import pallas as pl
from jax.experimental.pallas import tpu as pltpu


def _composite_kernel(bg_ref, img_ref, out_ref):
    # bg_ref : SMEM (3,) float32      background color, one scalar per RGB channel
    # img_ref: VMEM (TB, 4, T)        RGBA tile (T lane-dense: multiple of 128 or full extent)
    # out_ref: VMEM (TB, 3, T)        composited RGB tile
    alpha = img_ref[:, 3, :].astype(jnp.float32)          # (TB, T)
    for c in range(3):                                    # static unroll over RGB channels
        bg_c = bg_ref[c]                                  # scalar from SMEM
        rgb_c = img_ref[:, c, :].astype(jnp.float32)
        # rgb*a + (1-a)*bg == a*(rgb - bg) + bg  (fma-friendly, one fewer vmul)
        out_ref[:, c, :] = (alpha * (rgb_c - bg_c) + bg_c).astype(out_ref.dtype)


_TARGET_TILE_BYTES = 2 << 20  # ~2 MiB of in+out HBM traffic per grid step


def _pick_tiles(batch: int, hw: int, itemsize: int):
    """Choose (batch_tile, spatial_tile) that evenly divide (batch, hw) and hit ~2 MiB/step."""
    per_elem = 7 * itemsize           # 4 input channels + 3 output channels per spatial element
    per_image = per_elem * hw

    # Spatial tile: must be a multiple of 128 or the full extent (lane constraint).
    if hw % 128 != 0 or per_image <= _TARGET_TILE_BYTES:
        spatial_tile = hw
    else:
        n128 = hw // 128
        budget = max(1, _TARGET_TILE_BYTES // (128 * per_elem))
        spatial_tile = 128
        for d in range(min(budget, n128), 0, -1):          # largest divisor of n128 within budget
            if n128 % d == 0:
                spatial_tile = d * 128
                break

    # Batch tile: pack several small images per step to amortize per-step overhead.
    if spatial_tile == hw:
        per_step = per_elem * spatial_tile
        tb_budget = max(1, _TARGET_TILE_BYTES // max(per_step, 1))
        batch_tile = 1
        for d in range(min(tb_budget, batch), 0, -1):
            if batch % d == 0:
                batch_tile = d
                break
    else:
        batch_tile = 1
    return batch_tile, spatial_tile


def composite_alpha(img: jax.Array, background) -> jax.Array:
    """img: (..., C, H, W) with C in {3, 4}. background: scalar (int/float) or 3-sequence."""
    if img.shape[-3] == 3:
        # 3-channel input: module returns it unchanged.
        return img

    lead = img.shape[:-3]
    C, H, W = img.shape[-3:]
    assert C == 4, f"expected RGBA input, got C={C}"

    # Normalize background (handles Python ints like CompositeAlpha(0) as well as floats/tuples).
    if isinstance(background, (int, float)):
        background = (float(background),) * 3
    bg = jnp.asarray(background, dtype=jnp.float32).reshape(3)

    btot = math.prod(lead) if lead else 1
    hw = H * W
    x = img.reshape(btot, C, hw)        # free reshape: row-major contiguous, lane-dense last dim

    itemsize = jnp.dtype(img.dtype).itemsize
    tb, ts = _pick_tiles(btot, hw, itemsize)
    grid = (btot // tb, hw // ts)

    cost = pl.CostEstimate(
        flops=3 * 3 * btot * hw,                       # sub/mul/add per RGB output element
        transcendentals=0,
        bytes_accessed=btot * 7 * hw * itemsize,       # read RGBA + write RGB
    )

    out = pl.pallas_call(
        _composite_kernel,
        out_shape=jax.ShapeDtypeStruct((btot, 3, hw), img.dtype),
        grid_spec=pltpu.PrefetchScalarGridSpec(
            num_scalar_prefetch=0,
            grid=grid,
            in_specs=[
                # tiny background vector lives in SMEM, untiled
                pl.BlockSpec(memory_space=pltpu.MemorySpace.SMEM),
                pl.BlockSpec((tb, 4, ts), lambda b, s: (b, 0, s)),
            ],
            out_specs=pl.BlockSpec((tb, 3, ts), lambda b, s: (b, 0, s)),
        ),
        compiler_params=pltpu.CompilerParams(
            dimension_semantics=("parallel", "parallel"),   # v7x dual-TC; neutral on v5e/v6e
        ),
        cost_estimate=cost,
    )(bg, x)
    return out.reshape(*lead, 3, H, W)


def _reference(img, background):
    if img.shape[-3] == 3:
        return img
    if isinstance(background, (int, float)):
        background = (float(background),) * 3
    bg = jnp.asarray(background, dtype=jnp.float32)[:, None, None]
    alpha = img[..., 3:4, :, :]
    rgb = img[..., :3, :, :]
    return (rgb * alpha + (1.0 - alpha) * bg).astype(img.dtype)


if __name__ == "__main__":
    key = jax.random.PRNGKey(0)
    B, C, H, W = 2, 4, 16, 16
    img = jax.random.uniform(key, (B, C, H, W), dtype=jnp.float32)
    background = 0.5  # matches CompositeAlpha(0.5)

    out = jax.block_until_ready(composite_alpha(img, background))
    ref = _reference(img, background)
    assert out.shape == (B, 3, H, W), out.shape
    assert jnp.allclose(out, ref, atol=1e-6, rtol=1e-6), "mismatch vs reference"

    # 3-channel passthrough path
    img3 = jax.random.uniform(jax.random.PRNGKey(1), (B, 3, H, W), dtype=jnp.float32)
    out3 = jax.block_until_ready(composite_alpha(img3, background))
    assert jnp.array_equal(out3, img3)

    # int background (CompositeAlpha(0)-style) path
    out0 = jax.block_until_ready(composite_alpha(img, 0))
    assert jnp.allclose(out0, _reference(img, 0), atol=1e-6, rtol=1e-6)

    print("KERNEL_OK")
</pallas_src>

<mosaic_0001>
module attributes {stable_mosaic.version = 11 : i64} {
  func.func @_composite_kernel(%arg0: i32, %arg1: i32, %arg2: memref<3xf32, #tpu.memory_space<smem>>, %arg3: memref<2x4x256xf32, #tpu.memory_space<vmem>>, %arg4: memref<2x3x256xf32, #tpu.memory_space<vmem>>) attributes {dimension_semantics = [#tpu.dimension_semantics<parallel>, #tpu.dimension_semantics<parallel>], iteration_bounds = array<i64: 1, 1>, scalar_prefetch = 0 : i64, scratch_operands = 0 : i64, tpu.core_type = #tpu.core_type<tc>, window_params = [{transform_indices = @transform_0, window_bounds = array<i64: 3>}, {transform_indices = @transform_1, window_bounds = array<i64: 2, 4, 256>}, {transform_indices = @transform_2, window_bounds = array<i64: 2, 3, 256>}]} {
    %c0 = arith.constant 0 : index
    %c3 = arith.constant 3 : index
    %c0_0 = arith.constant 0 : index
    %0 = vector.load %arg3[%c0, %c3, %c0_0] : memref<2x4x256xf32, #tpu.memory_space<vmem>>, vector<2x1x256xf32>
    %1 = vector.shape_cast %0 : vector<2x1x256xf32> to vector<2x256xf32>
    %c0_1 = arith.constant 0 : index
    %2 = memref.load %arg2[%c0_1] : memref<3xf32, #tpu.memory_space<smem>>
    %c0_2 = arith.constant 0 : index
    %c0_3 = arith.constant 0 : index
    %c0_4 = arith.constant 0 : index
    %3 = vector.load %arg3[%c0_2, %c0_3, %c0_4] : memref<2x4x256xf32, #tpu.memory_space<vmem>>, vector<2x1x256xf32>
    %4 = vector.shape_cast %3 : vector<2x1x256xf32> to vector<2x256xf32>
    %5 = vector.broadcast %2 : f32 to vector<2x256xf32>
    %6 = arith.subf %4, %5 : vector<2x256xf32>
    %7 = arith.mulf %1, %6 : vector<2x256xf32>
    %8 = vector.broadcast %2 : f32 to vector<2x256xf32>
    %9 = arith.addf %7, %8 : vector<2x256xf32>
    %c0_5 = arith.constant 0 : index
    %c0_6 = arith.constant 0 : index
    %c0_7 = arith.constant 0 : index
    %10 = vector.load %arg4[%c0_5, %c0_6, %c0_7] : memref<2x3x256xf32, #tpu.memory_space<vmem>>, vector<2x1x256xf32>
    %11 = vector.shape_cast %10 : vector<2x1x256xf32> to vector<2x256xf32>
    %12 = vector.shape_cast %9 : vector<2x256xf32> to vector<2x1x256xf32>
    tpu.vector_store %arg4[%c0_5, %c0_6, %c0_7], %12 {strides = array<i32>} : memref<2x3x256xf32, #tpu.memory_space<vmem>>, vector<2x1x256xf32>,
    %c1 = arith.constant 1 : index
    %13 = memref.load %arg2[%c1] : memref<3xf32, #tpu.memory_space<smem>>
    %c0_8 = arith.constant 0 : index
    %c1_9 = arith.constant 1 : index
    %c0_10 = arith.constant 0 : index
    %14 = vector.load %arg3[%c0_8, %c1_9, %c0_10] : memref<2x4x256xf32, #tpu.memory_space<vmem>>, vector<2x1x256xf32>
    %15 = vector.shape_cast %14 : vector<2x1x256xf32> to vector<2x256xf32>
    %16 = vector.broadcast %13 : f32 to vector<2x256xf32>
    %17 = arith.subf %15, %16 : vector<2x256xf32>
    %18 = arith.mulf %1, %17 : vector<2x256xf32>
    %19 = vector.broadcast %13 : f32 to vector<2x256xf32>
    %20 = arith.addf %18, %19 : vector<2x256xf32>
    %c0_11 = arith.constant 0 : index
    %c1_12 = arith.constant 1 : index
    %c0_13 = arith.constant 0 : index
    %21 = vector.load %arg4[%c0_11, %c1_12, %c0_13] : memref<2x3x256xf32, #tpu.memory_space<vmem>>, vector<2x1x256xf32>
    %22 = vector.shape_cast %21 : vector<2x1x256xf32> to vector<2x256xf32>
    %23 = vector.shape_cast %20 : vector<2x256xf32> to vector<2x1x256xf32>
    tpu.vector_store %arg4[%c0_11, %c1_12, %c0_13], %23 {strides = array<i32>} : memref<2x3x256xf32, #tpu.memory_space<vmem>>, vector<2x1x256xf32>,
    %c2 = arith.constant 2 : index
    %24 = memref.load %arg2[%c2] : memref<3xf32, #tpu.memory_space<smem>>
    %c0_14 = arith.constant 0 : index
    %c2_15 = arith.constant 2 : index
    %c0_16 = arith.constant 0 : index
    %25 = vector.load %arg3[%c0_14, %c2_15, %c0_16] : memref<2x4x256xf32, #tpu.memory_space<vmem>>, vector<2x1x256xf32>
    %26 = vector.shape_cast %25 : vector<2x1x256xf32> to vector<2x256xf32>
    %27 = vector.broadcast %24 : f32 to vector<2x256xf32>
    %28 = arith.subf %26, %27 : vector<2x256xf32>
    %29 = arith.mulf %1, %28 : vector<2x256xf32>
    %30 = vector.broadcast %24 : f32 to vector<2x256xf32>
    %31 = arith.addf %29, %30 : vector<2x256xf32>
    %c0_17 = arith.constant 0 : index
    %c2_18 = arith.constant 2 : index
    %c0_19 = arith.constant 0 : index
    %32 = vector.load %arg4[%c0_17, %c2_18, %c0_19] : memref<2x3x256xf32, #tpu.memory_space<vmem>>, vector<2x1x256xf32>
    %33 = vector.shape_cast %32 : vector<2x1x256xf32> to vector<2x256xf32>
    %34 = vector.shape_cast %31 : vector<2x256xf32> to vector<2x1x256xf32>
    tpu.vector_store %arg4[%c0_17, %c2_18, %c0_19], %34 {strides = array<i32>} : memref<2x3x256xf32, #tpu.memory_space<vmem>>, vector<2x1x256xf32>,
    return
  }
  func.func @transform_0(%arg0: i32, %arg1: i32) -> i32 {
    %c0_i32 = arith.constant 0 : i32
    %c0_i32_0 = arith.constant 0 : i32
    return %c0_i32 : i32
  }
  func.func @transform_1(%arg0: i32, %arg1: i32) -> (i32, i32, i32) {
    %c0_i32 = arith.constant 0 : i32
    %c0_i32_0 = arith.constant 0 : i32
    return %arg0, %c0_i32, %arg1 : i32, i32, i32
  }
  func.func @transform_2(%arg0: i32, %arg1: i32) -> (i32, i32, i32) {
    %c0_i32 = arith.constant 0 : i32
    %c0_i32_0 = arith.constant 0 : i32
    return %arg0, %c0_i32, %arg1 : i32, i32, i32
  }
}

</mosaic_0001>

<llo_original>
// kernel: tpu_custom_call.1
$region0: #{tpu_custom_call.1}
  #allocation0 [shape = 'u32[]', space=smem, size = 0x4, offset = 0x4, fixed_abs, tag = 'smem constant byte address 0x4 - core index']
  #allocation1 [shape = 'u32[72,128]{1,0:T(1,128)}', space=vmem, size = 0x9000, scoped, tag = 'internal scratch']
  %s0 = inlined_call_operand.hbm [shape: f32[3], index: 0, kind: input, shape index: {}]
  %s1 = inlined_call_operand.hbm [shape: f32[2,4,256], index: 1, kind: input, shape index: {}]
  %s2 = inlined_call_operand.vmem [shape: f32[2,3,256], index: 2, kind: output, shape index: {}]
  %s3 = sld [smem:[#allocation0]]
  $region26: #{tpu_custom_call.1} parent=0
    _
  %s5 = ssub.s32 1, %s3
  %s6 = scalar_select 0, %s5, %s3
  $region1: #{tpu_custom_call.1} parent=0
    #allocation2 [shape = 'u8[512]{0}', space=smem, size = 0x200, scoped, tag = 'input window, operand 0, single buffered']
    #allocation3 [shape = 's32[1]{0}', space=sflag, size = 0x4, scoped, tag = 'scoped memory for tpu_custom_call.1']
    #allocation4 [shape = 's32[1]{0}', space=sflag, size = 0x4, scoped, tag = 'scoped memory for tpu_custom_call.1']
    #allocation5 [shape = 'u8[8192]{0}', space=vmem, size = 0x2000, scoped, tag = 'input window, operand 1, single buffered']
    %7 = vsyncpa [#allocation4], 0
    %8 = vsyncpa [#allocation3], 0
    // Predicated region
    $region2: #{tpu_custom_call.1} parent=1 // pred_check
      _
    $region3: #{tpu_custom_call.1} parent=1 // pred_check_branch
      %10 = sbr.rel (0) target = $region5
    $region4: #{tpu_custom_call.1} parent=1 // pred_region
      %12 = vsyncadd [#allocation4], 0
      %s14 = sshll.u32 %s0, 4
      %s15 = int_to_ptr.hbm [resolvable:$true] %s14
      %17 = dma.hbm_to_smem %s15, 16, [#allocation2], [#allocation4]
    $region5: #{tpu_custom_call.1} parent=1 // pred_fallthru
      _
    // Predicated region
    $region6: #{tpu_custom_call.1} parent=1 // pred_check
      _
    $region7: #{tpu_custom_call.1} parent=1 // pred_check_branch
      %19 = sbr.rel (0) target = $region9
    $region8: #{tpu_custom_call.1} parent=1 // pred_region
      %21 = vsyncadd [#allocation3], 0
      %s22 = sshll.u32 %s1, 4
      %s23 = int_to_ptr.hbm [resolvable:$true] %s22
      %s24 = sshll.u32 [#allocation5], 4
      %s25 = int_to_ptr.vmem [resolvable:$true] %s24
      %30 = dma.hbm_to_vmem [thread:$0]  %s23, 256, %s25, [#allocation3], 128, 128, 8
    $region9: #{tpu_custom_call.1} parent=1 // pred_fallthru
      _
    // Predicated region
    $region10: #{tpu_custom_call.1} parent=1 // pred_check
      _
    $region11: #{tpu_custom_call.1} parent=1 // pred_check_branch
      %32 = sbr.rel (0) target = $region13
    $region12: #{tpu_custom_call.1} parent=1 // pred_region
      %34 = dma.done [#allocation4], 16
    $region13: #{tpu_custom_call.1} parent=1 // pred_fallthru
      _
    // Predicated region
    $region14: #{tpu_custom_call.1} parent=1 // pred_check
      _
    $region15: #{tpu_custom_call.1} parent=1 // pred_check_branch
      %36 = sbr.rel (0) target = $region17
    $region16: #{tpu_custom_call.1} parent=1 // pred_region
      %38 = dma.done [#allocation3], 256
    $region17: #{tpu_custom_call.1} parent=1 // pred_fallthru
      _
    %39 = sfence
    %s40 = scalar_lea.vmem [#allocation5], 3
    %v41 = vld [vmem:[%s40] ss:$4 sm:$0x3]
    %s42 = scalar_lea.vmem [#allocation5], 11
    %v43 = vld [vmem:[%s42] ss:$4 sm:$0x3]
    %s44 = sld [smem:[#allocation2]]
    %v45 = vld [vmem:[#allocation5] ss:$4 sm:$0x3]
    %s46 = scalar_lea.vmem [#allocation5], 8
    %v47 = vld [vmem:[%s46] ss:$4 sm:$0x3]
    %v48 = vstv %s44
    %v49 = vsub.f32 %v45, %v48
    %v50 = vsub.f32 %v47, %v48
    %v51 = vmul.f32 %v41, %v49
    %v52 = vmul.f32 %v43, %v50
    %v53 = vadd.f32 %v51, %v48
    %v54 = vadd.f32 %v52, %v48
    %v55 = vlaneseq
    %vm56 = vcmp.ge.s32.totalorder %v55, 0
    %vm57 = vcmp.lt.s32.totalorder %v55, 256
    %vm58 = vmand %vm56, %vm57
    %59 = vst.msk [vmem:[%s2] ss:$4 sm:$0x3] %vm58, %v53
    %s60 = scalar_lea.vmem %s2, 8
    %61 = vst.msk [vmem:[%s60] ss:$4 sm:$0x3] %vm58, %v54
    %s62 = sld [smem:[#allocation2 + $0x1]]
    %s63 = scalar_lea.vmem [#allocation5], 1
    %v64 = vld [vmem:[%s63] ss:$4 sm:$0x3]
    %s65 = scalar_lea.vmem [#allocation5], 9
    %v66 = vld [vmem:[%s65] ss:$4 sm:$0x3]
    %v67 = vstv %s62
    %v68 = vsub.f32 %v64, %v67
    %v69 = vsub.f32 %v66, %v67
    %v70 = vmul.f32 %v41, %v68
    %v71 = vmul.f32 %v43, %v69
    %v72 = vadd.f32 %v70, %v67
    %v73 = vadd.f32 %v71, %v67
    %s74 = scalar_lea.vmem %s2, 1
    %75 = vst.msk [vmem:[%s74] ss:$4 sm:$0x3] %vm58, %v72
    %s76 = scalar_lea.vmem %s2, 9
    %77 = vst.msk [vmem:[%s76] ss:$4 sm:$0x3] %vm58, %v73
    %s78 = sld [smem:[#allocation2 + $0x2]]
    %s79 = scalar_lea.vmem [#allocation5], 2
    %v80 = vld [vmem:[%s79] ss:$4 sm:$0x3]
    %s81 = scalar_lea.vmem [#allocation5], 10
    %v82 = vld [vmem:[%s81] ss:$4 sm:$0x3]
    %v83 = vstv %s78
    %v84 = vsub.f32 %v80, %v83
    %v85 = vsub.f32 %v82, %v83
    %v86 = vmul.f32 %v41, %v84
    %v87 = vmul.f32 %v43, %v85
    %v88 = vadd.f32 %v86, %v83
    %v89 = vadd.f32 %v87, %v83
    %s90 = scalar_lea.vmem %s2, 2
    %91 = vst.msk [vmem:[%s90] ss:$4 sm:$0x3] %vm58, %v88
    %s92 = scalar_lea.vmem %s2, 10
    %93 = vst.msk [vmem:[%s92] ss:$4 sm:$0x3] %vm58, %v89
    // Predicated region
    $region18: #{tpu_custom_call.1} parent=1 // pred_check
      _
    $region19: #{tpu_custom_call.1} parent=1 // pred_check_branch
      %95 = sbr.rel (0) target = $region21
    $region20: #{tpu_custom_call.1} parent=1 // pred_region
      _
    $region21: #{tpu_custom_call.1} parent=1 // pred_fallthru
      _
    // Predicated region
    $region22: #{tpu_custom_call.1} parent=1 // pred_check
      _
    $region23: #{tpu_custom_call.1} parent=1 // pred_check_branch
      %97 = sbr.rel (0) target = $region25
    $region24: #{tpu_custom_call.1} parent=1 // pred_region
      _
    $region25: #{tpu_custom_call.1} parent=1 // pred_fallthru
      _
    %98 = vsyncpa [#allocation3], 1
    %99 = vsyncpa [#allocation4], 1

</llo_original>
